<compile_context>
chip_gen: v6e
topology: v6e:2x2x1
jax: 0.10.0
libtpu: 0.0.40
codegen_flags: <defaults>
</compile_context>

<pallas_src>
import jax
import jax.numpy as jnp
from jax.experimental import pallas as pl
from jax.experimental.pallas import tpu as pltpu


def _round_up(x, m):
    return (x + m - 1) // m * m


def _elu(x):
    # ELU with alpha=1.0 (PyTorch default), computed in f32.
    # Negative branch: exact identity expm1(x) = tanh(x/2) * (exp(x) + 1),
    # which avoids the catastrophic cancellation of exp(x) - 1 near 0 while
    # using only ops with guaranteed Mosaic lowerings (exp / tanh -> EUP).
    # For large positive x the (unused) false branch is inf, which is safe
    # inside a select.
    em1 = jnp.tanh(0.5 * x) * (jnp.exp(x) + 1.0)
    return jnp.where(x > 0.0, x, em1)


def discriminator_kernel(ftT_ref, wd_ref, bd_ref, wwd_ref, out_ref):
    # ftT_ref : (Fp, tm)  transposed input tile: features on sublanes, rows on lanes
    # wd_ref  : (Fp, Fp)  d.weight in PyTorch [out, in] layout (used as Wd @ x^T)
    # bd_ref  : (Fp, 1)   d.bias as a column
    # wwd_ref : (Fp, 1)   wd.weight as a column (== wd.weight.T)
    # out_ref : (1, tm)   lane-dense row of logits for this tile
    x = ftT_ref[...].astype(jnp.float32)
    x = _elu(x)
    # TODO(synk): F.dropout(p=0.5, training=True) would need pltpu.prng_seed /
    # pltpu.prng_random_bits + a mask; this kernel implements eval mode (identity).

    # Main matmul on the MXU: h^T = Wd @ x^T. Operands stay in the parameter /
    # input dtype (bf16 -> native bf16 MXU path on v6e/v7x); accumulate in f32.
    h = jnp.dot(wd_ref[...], x.astype(wd_ref.dtype),
                preferred_element_type=jnp.float32)
    h = h + bd_ref[...].astype(jnp.float32)          # (Fp, 1) lane-broadcast, single VPU add
    h = _elu(h)

    # Width-1 projection: VPU multiply + sublane reduce (XLU) instead of a
    # second MXU matmul with a 1-wide output. Result is already lane-dense.
    p = jnp.sum(h * wwd_ref[...].astype(jnp.float32), axis=0, keepdims=True)
    out_ref[...] = p.astype(out_ref.dtype)


def discriminator_forward(ft, wd_weight, bd, wwd_weight, *, tm=1024):
    """LAGCL Discriminator forward.

    ft         : [N, F]  node features
    wd_weight  : [F, F]  self.d.weight   (PyTorch [out_features, in_features])
    bd         : [F]     self.d.bias
    wwd_weight : [1, F]  self.wd.weight  (bias=False)
    returns    : [N, 1]  prob (pre-sigmoid, exactly as the PyTorch forward)
    """
    N, F = ft.shape
    assert wd_weight.shape == (F, F) and bd.shape == (F,) and wwd_weight.shape == (1, F)

    # Pad rows to a multiple of 128 (lanes) and features to a multiple of 8
    # (sublanes). Zero padding is exact: padded feature rows / weight rows are
    # zero, padded node columns are sliced off the output.
    Np = _round_up(N, 128)
    Fp = _round_up(F, 8)
    # Large row tile (amortizes ~0.35us/step overhead), capped at N so small
    # inputs collapse to a single grid step; for large N this still yields many
    # "parallel" steps so v7x's two TensorCores both get work.
    tm = max(128, min(_round_up(tm, 128), Np))
    Np = _round_up(Np, tm)
    grid = Np // tm

    # Layout plumbing in the wrapper (not compute): transpose so features sit on
    # sublanes and rows on lanes; pad with zeros as needed.
    ftT = ft.T
    if (Fp, Np) != (F, N):
        ftT = jnp.zeros((Fp, Np), ft.dtype).at[:F, :N].set(ftT)
    wd = wd_weight
    if Fp != F:
        wd = jnp.zeros((Fp, Fp), wd_weight.dtype).at[:F, :F].set(wd_weight)
    bd_col = jnp.zeros((Fp, 1), bd.dtype).at[:F, 0].set(bd)
    wwd_col = jnp.zeros((Fp, 1), wwd_weight.dtype).at[:F, 0].set(wwd_weight[0])

    # TODO(synk): for large F (e.g. >= 2048 f32) the resident (Fp, Fp) Wd should
    # switch to a K-tiled reduction axis + f32 accumulator to stay inside v7x's
    # 64 MiB VMEM; irrelevant at F=32.
    out = pl.pallas_call(
        discriminator_kernel,
        out_shape=jax.ShapeDtypeStruct((1, Np), ft.dtype),
        grid_spec=pltpu.PrefetchScalarGridSpec(
            num_scalar_prefetch=0,
            grid=(grid,),
            in_specs=[
                pl.BlockSpec((Fp, tm), lambda i: (0, i)),   # ft^T tile (lane-dense rows)
                pl.BlockSpec((Fp, Fp), lambda i: (0, 0)),   # Wd (resident)
                pl.BlockSpec((Fp, 1), lambda i: (0, 0)),    # bd column (resident)
                pl.BlockSpec((Fp, 1), lambda i: (0, 0)),    # wwd column (resident)
            ],
            out_specs=pl.BlockSpec((1, tm), lambda i: (0, i)),  # lane-dense output row
        ),
        compiler_params=pltpu.CompilerParams(
            dimension_semantics=("parallel",),
            vmem_limit_bytes=32 * 1024 * 1024,
        ),
    )(ftT, wd, bd_col, wwd_col)

    return out[0, :N].reshape(N, 1)


def reference_forward(ft, wd_weight, bd, wwd_weight):
    x = jax.nn.elu(ft.astype(jnp.float32))
    h = jax.nn.elu(x @ wd_weight.T.astype(jnp.float32) + bd.astype(jnp.float32))
    return h @ wwd_weight.T.astype(jnp.float32)


if __name__ == "__main__":
    key = jax.random.PRNGKey(0)
    N, F = 256, 32  # small batch of node embeddings, in_features=32
    k_ft, k_wd, k_bd, k_wwd = jax.random.split(key, 4)

    ft = jax.random.normal(k_ft, (N, F), dtype=jnp.float32)
    # nn.Linear(F, F): weight [F, F], bias [F]
    bound_d = 1.0 / (F ** 0.5)
    wd_weight = jax.random.uniform(k_wd, (F, F), minval=-bound_d, maxval=bound_d,
                                   dtype=jnp.float32)
    bd = jax.random.uniform(k_bd, (F,), minval=-bound_d, maxval=bound_d,
                            dtype=jnp.float32)
    # nn.Linear(F, 1, bias=False): weight [1, F]
    wwd_weight = jax.random.uniform(k_wwd, (1, F), minval=-bound_d, maxval=bound_d,
                                    dtype=jnp.float32)

    out = discriminator_forward(ft, wd_weight, bd, wwd_weight)
    out = jax.block_until_ready(out)

    ref = reference_forward(ft, wd_weight, bd, wwd_weight)
    assert out.shape == (N, 1)
    assert jnp.allclose(out.astype(jnp.float32), ref, atol=1e-5, rtol=1e-5)
    print("KERNEL_OK")
</pallas_src>

<mosaic_0001>
module attributes {stable_mosaic.version = 11 : i64} {
  func.func @discriminator_kernel(%arg0: i32, %arg1: memref<32x256xf32, #tpu.memory_space<vmem>>, %arg2: memref<32x32xf32, #tpu.memory_space<vmem>>, %arg3: memref<32x1xf32, #tpu.memory_space<vmem>>, %arg4: memref<32x1xf32, #tpu.memory_space<vmem>>, %arg5: memref<1x256xf32, #tpu.memory_space<vmem>>) attributes {dimension_semantics = [#tpu.dimension_semantics<parallel>], iteration_bounds = array<i64: 1>, scalar_prefetch = 0 : i64, scratch_operands = 0 : i64, tpu.core_type = #tpu.core_type<tc>, window_params = [{transform_indices = @transform_0, window_bounds = array<i64: 32, 256>}, {pipeline_mode = #tpu.pipeline_mode<synchronous>, transform_indices = @transform_1, window_bounds = array<i64: 32, 32>}, {pipeline_mode = #tpu.pipeline_mode<synchronous>, transform_indices = @transform_2, window_bounds = array<i64: 32, 1>}, {pipeline_mode = #tpu.pipeline_mode<synchronous>, transform_indices = @transform_3, window_bounds = array<i64: 32, 1>}, {transform_indices = @transform_4, window_bounds = array<i64: 1, 256>}]} {
    %c0 = arith.constant 0 : index
    %c0_0 = arith.constant 0 : index
    %0 = vector.load %arg1[%c0, %c0_0] : memref<32x256xf32, #tpu.memory_space<vmem>>, vector<32x256xf32>
    %cst = arith.constant 5.000000e-01 : f32
    %1 = vector.broadcast %cst : f32 to vector<32x256xf32>
    %2 = arith.mulf %1, %0 : vector<32x256xf32>
    %3 = math.tanh %2 : vector<32x256xf32>
    %4 = math.exp %0 : vector<32x256xf32>
    %cst_1 = arith.constant 1.000000e+00 : f32
    %5 = vector.broadcast %cst_1 : f32 to vector<32x256xf32>
    %6 = arith.addf %4, %5 : vector<32x256xf32>
    %7 = arith.mulf %3, %6 : vector<32x256xf32>
    %cst_2 = arith.constant 0.000000e+00 : f32
    %8 = vector.broadcast %cst_2 : f32 to vector<32x256xf32>
    %9 = arith.cmpf ogt, %0, %8 : vector<32x256xf32>
    %10 = arith.select %9, %0, %7 : vector<32x256xi1>, vector<32x256xf32>
    %c0_3 = arith.constant 0 : index
    %c0_4 = arith.constant 0 : index
    %11 = vector.load %arg2[%c0_3, %c0_4] : memref<32x32xf32, #tpu.memory_space<vmem>>, vector<32x32xf32>
    %cst_5 = arith.constant dense<0.000000e+00> : vector<32x256xf32>
    %12 = tpu.matmul %11, %10, %cst_5 {dimension_numbers = #tpu.dot_dimension_numbers<[1], [0], [0], [1], [0, 0, 1, 1], [], []>} : vector<32x32xf32>, vector<32x256xf32>, vector<32x256xf32> -> vector<32x256xf32>
    %c0_6 = arith.constant 0 : index
    %c0_7 = arith.constant 0 : index
    %13 = vector.load %arg3[%c0_6, %c0_7] : memref<32x1xf32, #tpu.memory_space<vmem>>, vector<32x1xf32>
    %14 = vector.broadcast %13 : vector<32x1xf32> to vector<32x256xf32>
    %15 = arith.addf %12, %14 : vector<32x256xf32>
    %cst_8 = arith.constant 5.000000e-01 : f32
    %16 = vector.broadcast %cst_8 : f32 to vector<32x256xf32>
    %17 = arith.mulf %16, %15 : vector<32x256xf32>
    %18 = math.tanh %17 : vector<32x256xf32>
    %19 = math.exp %15 : vector<32x256xf32>
    %cst_9 = arith.constant 1.000000e+00 : f32
    %20 = vector.broadcast %cst_9 : f32 to vector<32x256xf32>
    %21 = arith.addf %19, %20 : vector<32x256xf32>
    %22 = arith.mulf %18, %21 : vector<32x256xf32>
    %cst_10 = arith.constant 0.000000e+00 : f32
    %23 = vector.broadcast %cst_10 : f32 to vector<32x256xf32>
    %24 = arith.cmpf ogt, %15, %23 : vector<32x256xf32>
    %25 = arith.select %24, %15, %22 : vector<32x256xi1>, vector<32x256xf32>
    %c0_11 = arith.constant 0 : index
    %c0_12 = arith.constant 0 : index
    %26 = vector.load %arg4[%c0_11, %c0_12] : memref<32x1xf32, #tpu.memory_space<vmem>>, vector<32x1xf32>
    %27 = vector.broadcast %26 : vector<32x1xf32> to vector<32x256xf32>
    %28 = arith.mulf %25, %27 : vector<32x256xf32>
    %cst_13 = arith.constant dense<0.000000e+00> : vector<256xf32>
    %29 = vector.multi_reduction <add>, %28, %cst_13 [0] : vector<32x256xf32> to vector<256xf32>
    %30 = vector.shape_cast %29 : vector<256xf32> to vector<1x256xf32>
    %c0_14 = arith.constant 0 : index
    %c0_15 = arith.constant 0 : index
    %31 = vector.load %arg5[%c0_14, %c0_15] : memref<1x256xf32, #tpu.memory_space<vmem>>, vector<1x256xf32>
    tpu.vector_store %arg5[%c0_14, %c0_15], %30 {strides = array<i32>} : memref<1x256xf32, #tpu.memory_space<vmem>>, vector<1x256xf32>,
    return
  }
  func.func @transform_0(%arg0: i32) -> (i32, i32) {
    %c0_i32 = arith.constant 0 : i32
    %c0_i32_0 = arith.constant 0 : i32
    return %c0_i32, %arg0 : i32, i32
  }
  func.func @transform_1(%arg0: i32) -> (i32, i32) {
    %c0_i32 = arith.constant 0 : i32
    %c0_i32_0 = arith.constant 0 : i32
    %c0_i32_1 = arith.constant 0 : i32
    return %c0_i32, %c0_i32_0 : i32, i32
  }
  func.func @transform_2(%arg0: i32) -> (i32, i32) {
    %c0_i32 = arith.constant 0 : i32
    %c0_i32_0 = arith.constant 0 : i32
    %c0_i32_1 = arith.constant 0 : i32
    return %c0_i32, %c0_i32_0 : i32, i32
  }
  func.func @transform_3(%arg0: i32) -> (i32, i32) {
    %c0_i32 = arith.constant 0 : i32
    %c0_i32_0 = arith.constant 0 : i32
    %c0_i32_1 = arith.constant 0 : i32
    return %c0_i32, %c0_i32_0 : i32, i32
  }
  func.func @transform_4(%arg0: i32) -> (i32, i32) {
    %c0_i32 = arith.constant 0 : i32
    %c0_i32_0 = arith.constant 0 : i32
    return %c0_i32, %arg0 : i32, i32
  }
}

</mosaic_0001>

<llo_original>
// kernel: tpu_custom_call.1
$region0: #{tpu_custom_call.1}
  #allocation0 [shape = 'u32[]', space=smem, size = 0x4, offset = 0x4, fixed_abs, tag = 'smem constant byte address 0x4 - core index']
  #allocation1 [shape = 'u32[144,128]{1,0:T(1,128)}', space=vmem, size = 0x12000, scoped, tag = 'internal scratch']
  %s0 = inlined_call_operand.vmem [shape: f32[32,256], index: 0, kind: input, shape index: {}]
  %s1 = inlined_call_operand.hbm [shape: f32[32,32], index: 1, kind: input, shape index: {}]
  %s2 = inlined_call_operand.vmem [shape: f32[32,1], index: 2, kind: input, shape index: {}]
  %s3 = inlined_call_operand.vmem [shape: f32[32,1], index: 3, kind: input, shape index: {}]
  %s4 = inlined_call_operand.hbm [shape: f32[1,256], index: 4, kind: output, shape index: {}]
  %s5 = sld [smem:[#allocation0]]
  $region30: #{tpu_custom_call.1} parent=0
    _
  %s7 = ssub.s32 1, %s5
  %s8 = scalar_select 0, %s7, %s5
  $region1: #{tpu_custom_call.1} parent=0
    #allocation2 [shape = 'u8[16384]{0}', space=vmem, size = 0x4000, scoped, tag = 'input window, operand 1, single buffered']
    #allocation3 [shape = 's32[1]{0}', space=sflag, size = 0x4, scoped, tag = 'scoped memory for tpu_custom_call.1']
    #allocation4 [shape = 's32[1]{0}', space=sflag, size = 0x4, scoped, tag = 'scoped memory for tpu_custom_call.1']
    #allocation5 [shape = 'u8[1024]{0}', space=vmem, size = 0x400, scoped, tag = 'output window, operand 0, single buffered']
    %9 = vsyncpa [#allocation3], 0
    %10 = vsyncpa [#allocation4], 0
    // Predicated region
    $region2: #{tpu_custom_call.1} parent=1 // pred_check
      _
    $region3: #{tpu_custom_call.1} parent=1 // pred_check_branch
      %12 = sbr.rel (0) target = $region5
    $region4: #{tpu_custom_call.1} parent=1 // pred_region
      _
    $region5: #{tpu_custom_call.1} parent=1 // pred_fallthru
      _
    // Predicated region
    $region6: #{tpu_custom_call.1} parent=1 // pred_check
      _
    $region7: #{tpu_custom_call.1} parent=1 // pred_check_branch
      %14 = sbr.rel (0) target = $region9
    $region8: #{tpu_custom_call.1} parent=1 // pred_region
      %s16 = ssub.s32 512, 512
      %17 = vsyncadd [#allocation3], %s16
      %s18 = sshll.u32 [#allocation2], 4
      %s19 = int_to_ptr.vmem [resolvable:$true] %s18
      %24 = dma.hbm_to_vmem [thread:$0]  %s1, 512, %s19, [#allocation3], 128, 128, 8
    $region9: #{tpu_custom_call.1} parent=1 // pred_fallthru
      _
    // Predicated region
    $region10: #{tpu_custom_call.1} parent=1 // pred_check
      _
    $region11: #{tpu_custom_call.1} parent=1 // pred_check_branch
      %26 = sbr.rel (0) target = $region13
    $region12: #{tpu_custom_call.1} parent=1 // pred_region
      _
    $region13: #{tpu_custom_call.1} parent=1 // pred_fallthru
      _
    // Predicated region
    $region14: #{tpu_custom_call.1} parent=1 // pred_check
      _
    $region15: #{tpu_custom_call.1} parent=1 // pred_check_branch
      %28 = sbr.rel (0) target = $region17
    $region16: #{tpu_custom_call.1} parent=1 // pred_region
      _
    $region17: #{tpu_custom_call.1} parent=1 // pred_fallthru
      _
    // Predicated region
    $region18: #{tpu_custom_call.1} parent=1 // pred_check
      _
    $region19: #{tpu_custom_call.1} parent=1 // pred_check_branch
      %30 = sbr.rel (0) target = $region21
    $region20: #{tpu_custom_call.1} parent=1 // pred_region
      %31 = dma.done [#allocation3], 512
    $region21: #{tpu_custom_call.1} parent=1 // pred_fallthru
      _
    %v32 = vld [vmem:[%s0] sm:$0xff]
    %v33 = vld [vmem:[%s0 + $0x8] sm:$0xff]
    %v34 = vld [vmem:[%s0 + $0x10] sm:$0xff]
    %v35 = vld [vmem:[%s0 + $0x18] sm:$0xff]
    %v36 = vld [vmem:[%s0 + $0x20] sm:$0xff]
    %v37 = vld [vmem:[%s0 + $0x28] sm:$0xff]
    %v38 = vld [vmem:[%s0 + $0x30] sm:$0xff]
    %v39 = vld [vmem:[%s0 + $0x38] sm:$0xff]
    %v40 = vmul.f32 %v32, 0.5
    %v41 = vmul.f32 %v33, 0.5
    %v42 = vmul.f32 %v34, 0.5
    %v43 = vmul.f32 %v35, 0.5
    %v44 = vmul.f32 %v36, 0.5
    %v45 = vmul.f32 %v37, 0.5
    %v46 = vmul.f32 %v38, 0.5
    %v47 = vmul.f32 %v39, 0.5
    %v48 = vtanh.pop %v40
    %v49 = vtanh.pop %v41
    %v50 = vtanh.pop %v42
    %v51 = vtanh.pop %v43
    %v52 = vtanh.pop %v44
    %v53 = vtanh.pop %v45
    %v54 = vtanh.pop %v46
    %v55 = vtanh.pop %v47
    %v56 = vmul.f32 %v32, 1.442695
    %v57 = vpow.pop %v56
    %v58 = vmul.f32 %v33, 1.442695
    %v59 = vpow.pop %v58
    %v60 = vmul.f32 %v34, 1.442695
    %v61 = vpow.pop %v60
    %v62 = vmul.f32 %v35, 1.442695
    %v63 = vpow.pop %v62
    %v64 = vmul.f32 %v36, 1.442695
    %v65 = vpow.pop %v64
    %v66 = vmul.f32 %v37, 1.442695
    %v67 = vpow.pop %v66
    %v68 = vmul.f32 %v38, 1.442695
    %v69 = vpow.pop %v68
    %v70 = vmul.f32 %v39, 1.442695
    %v71 = vpow.pop %v70
    %v72 = vadd.f32 %v57, 1.0
    %v73 = vadd.f32 %v59, 1.0
    %v74 = vadd.f32 %v61, 1.0
    %v75 = vadd.f32 %v63, 1.0
    %v76 = vadd.f32 %v65, 1.0
    %v77 = vadd.f32 %v67, 1.0
    %v78 = vadd.f32 %v69, 1.0
    %v79 = vadd.f32 %v71, 1.0
    %v80 = vmul.f32 %v48, %v72
    %v81 = vmul.f32 %v49, %v73
    %v82 = vmul.f32 %v50, %v74
    %v83 = vmul.f32 %v51, %v75
    %v84 = vmul.f32 %v52, %v76
    %v85 = vmul.f32 %v53, %v77
    %v86 = vmul.f32 %v54, %v78
    %v87 = vmul.f32 %v55, %v79
    %vm88 = vcmp.gt.f32.partialorder %v32, 0.0
    %vm89 = vcmp.gt.f32.partialorder %v33, 0.0
    %vm90 = vcmp.gt.f32.partialorder %v34, 0.0
    %vm91 = vcmp.gt.f32.partialorder %v35, 0.0
    %vm92 = vcmp.gt.f32.partialorder %v36, 0.0
    %vm93 = vcmp.gt.f32.partialorder %v37, 0.0
    %vm94 = vcmp.gt.f32.partialorder %v38, 0.0
    %vm95 = vcmp.gt.f32.partialorder %v39, 0.0
    %v96 = vsel %vm88, %v32, %v80
    %v97 = vsel %vm89, %v33, %v81
    %v98 = vsel %vm90, %v34, %v82
    %v99 = vsel %vm91, %v35, %v83
    %v100 = vsel %vm92, %v36, %v84
    %v101 = vsel %vm93, %v37, %v85
    %v102 = vsel %vm94, %v38, %v86
    %v103 = vsel %vm95, %v39, %v87
    %v104 = vld [vmem:[#allocation2] sm:$0xff]
    %v105 = vld [vmem:[#allocation2 + $0x8] sm:$0xff]
    %v106 = vld [vmem:[#allocation2 + $0x10] sm:$0xff]
    %v107 = vld [vmem:[#allocation2 + $0x18] sm:$0xff]
    %v108 = vld [vmem:[%s2] sm:$0xff]
    %v109 = vld [vmem:[%s2 + $0x8] sm:$0xff]
    %v110 = vld [vmem:[%s2 + $0x10] sm:$0xff]
    %v111 = vld [vmem:[%s2 + $0x18] sm:$0xff]
    %113 = vset.pattern.permute.xlu0 0
    %114 = vperm.xlu0 %113, %v108
    %v115 = vpop.permute.xlu0 %114
    %118 = vset.pattern.permute.xlu0 0
    %119 = vperm.xlu0 %118, %v109
    %v120 = vpop.permute.xlu0 %119
    %123 = vset.pattern.permute.xlu0 0
    %124 = vperm.xlu0 %123, %v110
    %v125 = vpop.permute.xlu0 %124
    %128 = vset.pattern.permute.xlu0 0
    %129 = vperm.xlu0 %128, %v111
    %v130 = vpop.permute.xlu0 %129
    %vm132 = vcmask 261120
    %v134 = vsel %vm132, %v104, 0
    %v137 = vsel %vm132, %v105, 0
    %v140 = vsel %vm132, %v106, 0
    %v143 = vsel %vm132, %v107, 0
    %145 = vmatprep.subr.mxu0 0.0
    %146 = vmatpush1.msra.mxu0 0.0
    %147 = vmatprep.subr.mxu0 0.0
    %148 = vmatpush1.msra.mxu0 0.0
    %149 = vmatprep.subr.mxu0 0.0
    %150 = vmatpush1.msra.mxu0 0.0
    %151 = vmatprep.subr.mxu0 0.0
    %152 = vmatpush1.msra.mxu0 0.0
    %153 = vmatprep.subr.mxu0 0.0
    %154 = vmatpush1.msra.mxu0 0.0
    %155 = vmatprep.subr.mxu0 0.0
    %156 = vmatpush1.msra.mxu0 0.0
    %157 = vmatprep.subr.mxu0 0.0
    %158 = vmatpush1.msra.mxu0 0.0
    %159 = vmatprep.subr.mxu0 0.0
    %160 = vmatpush1.msra.mxu0 0.0
    %161 = vmatprep.subr.mxu0 0.0
    %162 = vmatpush1.msra.mxu0 0.0
    %163 = vmatprep.subr.mxu0 0.0
    %164 = vmatpush1.msra.mxu0 0.0
    %165 = vmatprep.subr.mxu0 0.0
    %166 = vmatpush1.msra.mxu0 0.0
    %167 = vmatprep.subr.mxu0 0.0
    %168 = vmatpush1.msra.mxu0 0.0
    %169 = vmatprep.subr.mxu0 %v103
    %170 = vmatpush1.msra.mxu0 %v102
    %171 = vmatprep.subr.mxu0 %v101
    %172 = vmatpush1.msra.mxu0 %v100
    %173 = vmatprep.subr.mxu0 %v99
    %174 = vmatpush1.msra.mxu0 %v98
    %175 = vmatprep.subr.mxu0 %v97
    %176 = vmatpush1.msra.mxu0 %v96
    %177 = vmatprep.subr.mxu0 0.0
    %178 = vmatpush2.msra.mxu0 0.0
    %179 = vmatprep.subr.mxu0 0.0
    %180 = vmatpush2.msra.mxu0 0.0
    %181 = vmatprep.subr.mxu0 0.0
    %182 = vmatpush2.msra.mxu0 0.0
    %183 = vmatprep.subr.mxu0 0.0
    %184 = vmatpush2.msra.mxu0 0.0
    %185 = vmatprep.subr.mxu0 0.0
    %186 = vmatpush2.msra.mxu0 0.0
    %187 = vmatprep.subr.mxu0 0.0
    %188 = vmatpush2.msra.mxu0 0.0
    %189 = vmatprep.subr.mxu0 0.0
    %190 = vmatpush2.msra.mxu0 0.0
    %191 = vmatprep.subr.mxu0 0.0
    %192 = vmatpush2.msra.mxu0 0.0
    %193 = vmatprep.subr.mxu0 0.0
    %194 = vmatpush2.msra.mxu0 0.0
    %195 = vmatprep.subr.mxu0 0.0
    %196 = vmatpush2.msra.mxu0 0.0
    %197 = vmatprep.subr.mxu0 0.0
    %198 = vmatpush2.msra.mxu0 0.0
    %199 = vmatprep.subr.mxu0 0.0
    %200 = vmatpush2.msra.mxu0 0.0
    %201 = vmatprep.subr.mxu0 0.0
    %202 = vmatpush2.msra.mxu0 0.0
    %203 = vmatprep.subr.mxu0 0.0
    %204 = vmatpush2.msra.mxu0 0.0
    %205 = vmatprep.subr.mxu0 0.0
    %206 = vmatpush2.msra.mxu0 0.0
    %207 = vmatprep.subr.mxu0 0.0
    %208 = vmatpush2.msra.mxu0 0.0
    %209 = vmatprep.mubr.f32.mxu0 0.0
    %210 = vmatmul.mubr.f32.gmra.mxu0 %v134
    %v211 = vpop.f32.mrf.mxu0
    %v212 = vadd.f32 %v115, %v211
    %v213 = vpop.f32.mrf.mxu0
    %v214 = vadd.f32 %v115, %v213
    %215 = vmatprep.mubr.f32.mxu0 0.0
    %216 = vmatmul.mubr.f32.gmra.mxu0 %v137
    %v217 = vpop.f32.mrf.mxu0
    %v218 = vadd.f32 %v120, %v217
    %v219 = vpop.f32.mrf.mxu0
    %v220 = vadd.f32 %v120, %v219
    %221 = vmatprep.mubr.f32.mxu0 0.0
    %222 = vmatmul.mubr.f32.gmra.mxu0 %v140
    %v223 = vpop.f32.mrf.mxu0
    %v224 = vadd.f32 %v125, %v223
    %v225 = vpop.f32.mrf.mxu0
    %v226 = vadd.f32 %v125, %v225
    %227 = vmatprep.mubr.f32.mxu0 0.0
    %228 = vmatmul.mubr.f32.gmra.mxu0 %v143
    %v229 = vpop.f32.mrf.mxu0
    %v230 = vadd.f32 %v130, %v229
    %v231 = vpop.f32.mrf.mxu0
    %v232 = vadd.f32 %v130, %v231
    %233 = vdwg.mxu0
    %v234 = vmul.f32 %v212, 0.5
    %v235 = vmul.f32 %v214, 0.5
    %v236 = vmul.f32 %v218, 0.5
    %v237 = vmul.f32 %v220, 0.5
    %v238 = vmul.f32 %v224, 0.5
    %v239 = vmul.f32 %v226, 0.5
    %v240 = vmul.f32 %v230, 0.5
    %v241 = vmul.f32 %v232, 0.5
    %v242 = vtanh.pop %v234
    %v243 = vtanh.pop %v235
    %v244 = vtanh.pop %v236
    %v245 = vtanh.pop %v237
    %v246 = vtanh.pop %v238
    %v247 = vtanh.pop %v239
    %v248 = vtanh.pop %v240
    %v249 = vtanh.pop %v241
    %v250 = vmul.f32 %v212, 1.442695
    %v251 = vpow.pop %v250
    %v252 = vmul.f32 %v214, 1.442695
    %v253 = vpow.pop %v252
    %v254 = vmul.f32 %v218, 1.442695
    %v255 = vpow.pop %v254
    %v256 = vmul.f32 %v220, 1.442695
    %v257 = vpow.pop %v256
    %v258 = vmul.f32 %v224, 1.442695
    %v259 = vpow.pop %v258
    %v260 = vmul.f32 %v226, 1.442695
    %v261 = vpow.pop %v260
    %v262 = vmul.f32 %v230, 1.442695
    %v263 = vpow.pop %v262
    %v264 = vmul.f32 %v232, 1.442695
    %v265 = vpow.pop %v264
    %v266 = vadd.f32 %v251, 1.0
    %v267 = vadd.f32 %v253, 1.0
    %v268 = vadd.f32 %v255, 1.0
    %v269 = vadd.f32 %v257, 1.0
    %v270 = vadd.f32 %v259, 1.0
    %v271 = vadd.f32 %v261, 1.0
    %v272 = vadd.f32 %v263, 1.0
    %v273 = vadd.f32 %v265, 1.0
    %v274 = vmul.f32 %v242, %v266
    %v275 = vmul.f32 %v243, %v267
    %v276 = vmul.f32 %v244, %v268
    %v277 = vmul.f32 %v245, %v269
    %v278 = vmul.f32 %v246, %v270
    %v279 = vmul.f32 %v247, %v271
    %v280 = vmul.f32 %v248, %v272
    %v281 = vmul.f32 %v249, %v273
    %vm282 = vcmp.gt.f32.partialorder %v212, 0.0
    %vm283 = vcmp.gt.f32.partialorder %v214, 0.0
    %vm284 = vcmp.gt.f32.partialorder %v218, 0.0
    %vm285 = vcmp.gt.f32.partialorder %v220, 0.0
    %vm286 = vcmp.gt.f32.partialorder %v224, 0.0
    %vm287 = vcmp.gt.f32.partialorder %v226, 0.0
    %vm288 = vcmp.gt.f32.partialorder %v230, 0.0
    %vm289 = vcmp.gt.f32.partialorder %v232, 0.0
    %v290 = vsel %vm282, %v212, %v274
    %v291 = vsel %vm283, %v214, %v275
    %v292 = vsel %vm284, %v218, %v276
    %v293 = vsel %vm285, %v220, %v277
    %v294 = vsel %vm286, %v224, %v278
    %v295 = vsel %vm287, %v226, %v279
    %v296 = vsel %vm288, %v230, %v280
    %v297 = vsel %vm289, %v232, %v281
    %v298 = vld [vmem:[%s3] sm:$0xff]
    %v299 = vld [vmem:[%s3 + $0x8] sm:$0xff]
    %v300 = vld [vmem:[%s3 + $0x10] sm:$0xff]
    %v301 = vld [vmem:[%s3 + $0x18] sm:$0xff]
    %303 = vset.pattern.permute.xlu0 0
    %304 = vperm.xlu0 %303, %v298
    %v305 = vpop.permute.xlu0 %304
    %308 = vset.pattern.permute.xlu0 0
    %309 = vperm.xlu0 %308, %v299
    %v310 = vpop.permute.xlu0 %309
    %313 = vset.pattern.permute.xlu0 0
    %314 = vperm.xlu0 %313, %v300
    %v315 = vpop.permute.xlu0 %314
    %318 = vset.pattern.permute.xlu0 0
    %319 = vperm.xlu0 %318, %v301
    %v320 = vpop.permute.xlu0 %319
    %v322 = vmul.f32 %v290, %v305
    %v323 = vmul.f32 %v291, %v305
    %v324 = vmul.f32 %v292, %v310
    %v325 = vmul.f32 %v293, %v310
    %v326 = vmul.f32 %v294, %v315
    %v327 = vmul.f32 %v295, %v315
    %v328 = vmul.f32 %v296, %v320
    %v329 = vmul.f32 %v297, %v320
    %v330 = vadd.f32 %v322, %v324
    %v331 = vadd.f32 %v330, %v326
    %v332 = vadd.f32 %v331, %v328
    %v333 = vrot.slane %v332, 4
    %v334 = vadd.f32 %v332, %v333
    %v335 = vrot.slane %v334, 2
    %v336 = vadd.f32 %v334, %v335
    %v337 = vrot.slane %v336, 1
    %v338 = vadd.f32 %v336, %v337
    %v339 = vadd.f32 %v323, %v325
    %v340 = vadd.f32 %v339, %v327
    %v341 = vadd.f32 %v340, %v329
    %v342 = vrot.slane %v341, 4
    %v343 = vadd.f32 %v341, %v342
    %v344 = vrot.slane %v343, 2
    %v345 = vadd.f32 %v343, %v344
    %v346 = vrot.slane %v345, 1
    %v347 = vadd.f32 %v345, %v346
    %v350 = vcombine.low %v338, %v347
    %v352 = vunpack.c.l.s4 1966171168
    %v353 = vunpack.c.0.s8 %v352
    %v354 = vlaneseq
    %v355 = vshrl.u32 %v354, 7
    %v356 = vsub.s32 %v353, %v355
    %v357 = vrot.slane %v350, %v356
    %v359 = vunpack.c.l.s4 1966171168
    %v360 = vunpack.c.0.s8 %v359
    %v361 = vlaneseq
    %v362 = vshrl.u32 %v361, 7
    %v363 = vsub.s32 %v360, %v362
    %v364 = vrot.slane %v357, %v363
    %v366 = vlaneseq
    %vm367 = vcmp.ge.s32.totalorder %v366, 0
    %vm368 = vcmp.lt.s32.totalorder %v366, 256
    %vm369 = vmand %vm367, %vm368
    %370 = vst.msk [vmem:[#allocation5] sm:$0x3] %vm369, %v364
    // Predicated region
    $region22: #{tpu_custom_call.1} parent=1 // pred_check
      _
    $region23: #{tpu_custom_call.1} parent=1 // pred_check_branch
      %372 = sbr.rel (0) target = $region25
    $region24: #{tpu_custom_call.1} parent=1 // pred_region
      %s374 = ssub.s32 32, 32
      %375 = vsyncadd [#allocation4], %s374
      %s377 = sshll.u32 [#allocation5], 4
      %s378 = int_to_ptr.vmem [resolvable:$true] %s377
      %380 = dma.vmem_to_hbm [thread:$0]  %s378, 32, %s4, [#allocation4]
    $region25: #{tpu_custom_call.1} parent=1 // pred_fallthru
      _
    // Predicated region
    $region26: #{tpu_custom_call.1} parent=1 // pred_check
      _
    $region27: #{tpu_custom_call.1} parent=1 // pred_check_branch
      %382 = sbr.rel (0) target = $region29
    $region28: #{tpu_custom_call.1} parent=1 // pred_region
      %383 = dma.done [#allocation4], 32
    $region29: #{tpu_custom_call.1} parent=1 // pred_fallthru
      _
    %384 = vsyncpa [#allocation3], 1
    %385 = vsyncpa [#allocation4], 1

</llo_original>
